<compile_context>
chip_gen: v7x
topology: tpu7x:2x2x1
jax: 0.10.0
libtpu: 0.0.40
codegen_flags: <defaults>
</compile_context>

<pallas_src>
import functools

import jax
import jax.numpy as jnp
from jax.experimental import pallas as pl
from jax.experimental.pallas import tpu as pltpu


def _round_up(x: int, m: int) -> int:
    return (x + m - 1) // m * m


def caller_mlp_kernel(c1_ref, c2_ref, s_ref, st_ref,
                      w1a_ref, w1b_ref, w1c_ref, w1d_ref, b1_ref,
                      w2_ref, b2_ref, w3_ref, b3_ref,
                      out_ref):
    f32 = jnp.float32

    def fc1_term(w_ref, x_ref):
        w = w_ref[...]                           # (10, k)
        x = x_ref[...]                           # (k, TB)
        if w.shape[1] == 1:
            # Width-1 feature group (`suited`): rank-1 outer product on the
            # VPU; avoids an MXU dot whose K=1 would pad to a full tile.
            return w * x                         # (10,1)*(1,TB) -> (10,TB)
        return jnp.dot(w, x, preferred_element_type=f32)

    # ---- FC1 (30 -> 10): fused concat as four partial contractions -------
    h1 = (fc1_term(w1a_ref, c1_ref) + fc1_term(w1b_ref, c2_ref) +
          fc1_term(w1c_ref, s_ref) + fc1_term(w1d_ref, st_ref))
    h1 = jnp.maximum(h1 + b1_ref[...], 0.0)                      # (10, TB)

    # ---- FC2 (10 -> 5) on the MXU -----------------------------------------
    h2 = jnp.dot(w2_ref[...], h1, preferred_element_type=f32) + b2_ref[...]
    h2 = jnp.maximum(h2, 0.0)                                    # (5, TB)

    # ---- FC3 (5 -> 1) + sigmoid, fully lane-dense -------------------------
    z = jnp.dot(w3_ref[...], h2, preferred_element_type=f32) + b3_ref[...]
    out_ref[...] = jax.nn.sigmoid(z)                             # (1, TB)


@functools.partial(jax.jit, static_argnames=("block_b",))
def caller_forward(card1, card2, suited, stacksize, params, *, block_b=16384):
    """Fused Caller forward: concat + FC1/ReLU + FC2/ReLU + FC3/sigmoid."""
    f32 = jnp.float32

    # Feature-major: (B, feat) -> (feat, B) so the batch rides in the lanes.
    c1 = card1.astype(f32).T
    c2 = card2.astype(f32).T
    s = suited.astype(f32).T
    st = stacksize.astype(f32).T

    B = card1.shape[0]
    d1, d2, d3, d4 = c1.shape[0], c2.shape[0], s.shape[0], st.shape[0]
    w1 = params["w1"]                                  # (10, 30) torch layout
    assert d1 + d2 + d3 + d4 == w1.shape[1]

    # Batch tile lives in the lane dimension -> multiple of 128.  Pallas
    # masks the tail block on writeback, so no wrapper-side padding of B.
    TB = min(block_b, _round_up(B, 128))
    grid = (pl.cdiv(B, TB),)

    # Column split of W1 matching the fused feature concat.
    w1a = w1[:, :d1]
    w1b = w1[:, d1:d1 + d2]
    w1c = w1[:, d1 + d2:d1 + d2 + d3]
    w1d = w1[:, d1 + d2 + d3:]

    def batch_spec(feat):
        return pl.BlockSpec((feat, TB), lambda i: (0, i))

    def resident_spec(shape):
        # Constant index_map -> fetched once, stays resident in VMEM.
        return pl.BlockSpec(shape, lambda i: (0, 0))

    out = pl.pallas_call(
        caller_mlp_kernel,
        out_shape=jax.ShapeDtypeStruct((1, B), f32),
        grid=grid,
        in_specs=[
            batch_spec(d1), batch_spec(d2), batch_spec(d3), batch_spec(d4),
            resident_spec(w1a.shape), resident_spec(w1b.shape),
            resident_spec(w1c.shape), resident_spec(w1d.shape),
            resident_spec(params["b1"].shape),
            resident_spec(params["w2"].shape),
            resident_spec(params["b2"].shape),
            resident_spec(params["w3"].shape),
            resident_spec(params["b3"].shape),
        ],
        out_specs=pl.BlockSpec((1, TB), lambda i: (0, i)),
        compiler_params=pltpu.CompilerParams(
            dimension_semantics=("parallel",),          # megacore split (v7x)
            vmem_limit_bytes=48 * 1024 * 1024),         # safe on v5e/v6e/v7x
    )(c1, c2, s, st,
      w1a, w1b, w1c, w1d, params["b1"],
      params["w2"], params["b2"], params["w3"], params["b3"])

    # (1, B) -> (B, 1): same contiguous layout, free reshape.
    return out.reshape(B, 1)


def init_params(key):
    """Deterministic synthetic params in torch nn.Linear layout.

    W = (out_features, in_features), b = (out_features, 1).
    """
    k1, k2, k3, k4, k5, k6 = jax.random.split(key, 6)
    scale = 0.1
    return {
        "w1": scale * jax.random.normal(k1, (10, 30), jnp.float32),
        "b1": scale * jax.random.normal(k2, (10, 1), jnp.float32),
        "w2": scale * jax.random.normal(k3, (5, 10), jnp.float32),
        "b2": scale * jax.random.normal(k4, (5, 1), jnp.float32),
        "w3": scale * jax.random.normal(k5, (1, 5), jnp.float32),
        "b3": scale * jax.random.normal(k6, (1, 1), jnp.float32),
    }


def _reference(card1, card2, suited, stacksize, params):
    """Pure-JAX reference, same math as the torch forward."""
    x = jnp.concatenate([card1, card2, suited, stacksize], axis=1)
    h1 = jnp.maximum(x @ params["w1"].T + params["b1"].T, 0.0)
    h2 = jnp.maximum(h1 @ params["w2"].T + params["b2"].T, 0.0)
    return jax.nn.sigmoid(h2 @ params["w3"].T + params["b3"].T)


if __name__ == "__main__":
    key = jax.random.PRNGKey(0)
    kp, kc1, kc2, ks, kst = jax.random.split(key, 5)

    params = init_params(kp)

    # Small example batch; feature split 13 + 13 + 1 + 3 = 30 features.
    B = 8
    card1 = jax.random.normal(kc1, (B, 13), jnp.float32)
    card2 = jax.random.normal(kc2, (B, 13), jnp.float32)
    suited = jax.random.normal(ks, (B, 1), jnp.float32)
    stacksize = jax.random.normal(kst, (B, 3), jnp.float32)

    out = jax.block_until_ready(
        caller_forward(card1, card2, suited, stacksize, params))
    ref = _reference(card1, card2, suited, stacksize, params)
    assert out.shape == (B, 1)
    assert jnp.allclose(out, ref, atol=1e-5, rtol=1e-5)

    # Also exercise the multi-step grid + masked tail-block path (no pad).
    B2 = 300
    kc1b, kc2b, ksb, kstb = jax.random.split(jax.random.PRNGKey(1), 4)
    card1b = jax.random.normal(kc1b, (B2, 13), jnp.float32)
    card2b = jax.random.normal(kc2b, (B2, 13), jnp.float32)
    suitedb = jax.random.normal(ksb, (B2, 1), jnp.float32)
    stacksizeb = jax.random.normal(kstb, (B2, 3), jnp.float32)
    out2 = jax.block_until_ready(
        caller_forward(card1b, card2b, suitedb, stacksizeb, params,
                       block_b=256))
    ref2 = _reference(card1b, card2b, suitedb, stacksizeb, params)
    assert out2.shape == (B2, 1)
    assert jnp.allclose(out2, ref2, atol=1e-5, rtol=1e-5)

    print("KERNEL_OK")
</pallas_src>

<mosaic_0001>
module attributes {stable_mosaic.version = 11 : i64} {
  func.func @caller_mlp_kernel(%arg0: i32, %arg1: memref<13x128xf32, #tpu.memory_space<vmem>>, %arg2: memref<13x128xf32, #tpu.memory_space<vmem>>, %arg3: memref<1x128xf32, #tpu.memory_space<vmem>>, %arg4: memref<3x128xf32, #tpu.memory_space<vmem>>, %arg5: memref<10x13xf32, #tpu.memory_space<vmem>>, %arg6: memref<10x13xf32, #tpu.memory_space<vmem>>, %arg7: memref<10x1xf32, #tpu.memory_space<vmem>>, %arg8: memref<10x3xf32, #tpu.memory_space<vmem>>, %arg9: memref<10x1xf32, #tpu.memory_space<vmem>>, %arg10: memref<5x10xf32, #tpu.memory_space<vmem>>, %arg11: memref<5x1xf32, #tpu.memory_space<vmem>>, %arg12: memref<1x5xf32, #tpu.memory_space<vmem>>, %arg13: memref<1x1xf32, #tpu.memory_space<vmem>>, %arg14: memref<1x128xf32, #tpu.memory_space<vmem>>) attributes {dimension_semantics = [#tpu.dimension_semantics<parallel>], iteration_bounds = array<i64: 1>, scalar_prefetch = 0 : i64, scratch_operands = 0 : i64, tpu.core_type = #tpu.core_type<tc>, window_params = [{transform_indices = @transform_0, window_bounds = array<i64: 13, 128>}, {transform_indices = @transform_1, window_bounds = array<i64: 13, 128>}, {transform_indices = @transform_2, window_bounds = array<i64: 1, 128>}, {transform_indices = @transform_3, window_bounds = array<i64: 3, 128>}, {pipeline_mode = #tpu.pipeline_mode<synchronous>, transform_indices = @transform_4, window_bounds = array<i64: 10, 13>}, {pipeline_mode = #tpu.pipeline_mode<synchronous>, transform_indices = @transform_5, window_bounds = array<i64: 10, 13>}, {pipeline_mode = #tpu.pipeline_mode<synchronous>, transform_indices = @transform_6, window_bounds = array<i64: 10, 1>}, {pipeline_mode = #tpu.pipeline_mode<synchronous>, transform_indices = @transform_7, window_bounds = array<i64: 10, 3>}, {pipeline_mode = #tpu.pipeline_mode<synchronous>, transform_indices = @transform_8, window_bounds = array<i64: 10, 1>}, {pipeline_mode = #tpu.pipeline_mode<synchronous>, transform_indices = @transform_9, window_bounds = array<i64: 5, 10>}, {pipeline_mode = #tpu.pipeline_mode<synchronous>, transform_indices = @transform_10, window_bounds = array<i64: 5, 1>}, {pipeline_mode = #tpu.pipeline_mode<synchronous>, transform_indices = @transform_11, window_bounds = array<i64: 1, 5>}, {pipeline_mode = #tpu.pipeline_mode<synchronous>, transform_indices = @transform_12, window_bounds = array<i64: 1, 1>}, {transform_indices = @transform_13, window_bounds = array<i64: 1, 128>}]} {
    %c0 = arith.constant 0 : index
    %c0_0 = arith.constant 0 : index
    %0 = vector.load %arg5[%c0, %c0_0] : memref<10x13xf32, #tpu.memory_space<vmem>>, vector<10x13xf32>
    %c0_1 = arith.constant 0 : index
    %c0_2 = arith.constant 0 : index
    %1 = vector.load %arg1[%c0_1, %c0_2] : memref<13x128xf32, #tpu.memory_space<vmem>>, vector<13x128xf32>
    %cst = arith.constant dense<0.000000e+00> : vector<10x128xf32>
    %2 = tpu.matmul %0, %1, %cst {dimension_numbers = #tpu.dot_dimension_numbers<[1], [0], [0], [1], [0, 0, 1, 1], [], []>} : vector<10x13xf32>, vector<13x128xf32>, vector<10x128xf32> -> vector<10x128xf32>
    %c0_3 = arith.constant 0 : index
    %c0_4 = arith.constant 0 : index
    %3 = vector.load %arg6[%c0_3, %c0_4] : memref<10x13xf32, #tpu.memory_space<vmem>>, vector<10x13xf32>
    %c0_5 = arith.constant 0 : index
    %c0_6 = arith.constant 0 : index
    %4 = vector.load %arg2[%c0_5, %c0_6] : memref<13x128xf32, #tpu.memory_space<vmem>>, vector<13x128xf32>
    %cst_7 = arith.constant dense<0.000000e+00> : vector<10x128xf32>
    %5 = tpu.matmul %3, %4, %cst_7 {dimension_numbers = #tpu.dot_dimension_numbers<[1], [0], [0], [1], [0, 0, 1, 1], [], []>} : vector<10x13xf32>, vector<13x128xf32>, vector<10x128xf32> -> vector<10x128xf32>
    %6 = arith.addf %2, %5 : vector<10x128xf32>
    %c0_8 = arith.constant 0 : index
    %c0_9 = arith.constant 0 : index
    %7 = vector.load %arg7[%c0_8, %c0_9] : memref<10x1xf32, #tpu.memory_space<vmem>>, vector<10x1xf32>
    %c0_10 = arith.constant 0 : index
    %c0_11 = arith.constant 0 : index
    %8 = vector.load %arg3[%c0_10, %c0_11] : memref<1x128xf32, #tpu.memory_space<vmem>>, vector<1x128xf32>
    %9 = vector.broadcast %7 : vector<10x1xf32> to vector<10x128xf32>
    %10 = vector.broadcast %8 : vector<1x128xf32> to vector<10x128xf32>
    %11 = arith.mulf %9, %10 : vector<10x128xf32>
    %12 = arith.addf %6, %11 : vector<10x128xf32>
    %c0_12 = arith.constant 0 : index
    %c0_13 = arith.constant 0 : index
    %13 = vector.load %arg8[%c0_12, %c0_13] : memref<10x3xf32, #tpu.memory_space<vmem>>, vector<10x3xf32>
    %c0_14 = arith.constant 0 : index
    %c0_15 = arith.constant 0 : index
    %14 = vector.load %arg4[%c0_14, %c0_15] : memref<3x128xf32, #tpu.memory_space<vmem>>, vector<3x128xf32>
    %cst_16 = arith.constant dense<0.000000e+00> : vector<10x128xf32>
    %15 = tpu.matmul %13, %14, %cst_16 {dimension_numbers = #tpu.dot_dimension_numbers<[1], [0], [0], [1], [0, 0, 1, 1], [], []>} : vector<10x3xf32>, vector<3x128xf32>, vector<10x128xf32> -> vector<10x128xf32>
    %16 = arith.addf %12, %15 : vector<10x128xf32>
    %c0_17 = arith.constant 0 : index
    %c0_18 = arith.constant 0 : index
    %17 = vector.load %arg9[%c0_17, %c0_18] : memref<10x1xf32, #tpu.memory_space<vmem>>, vector<10x1xf32>
    %18 = vector.broadcast %17 : vector<10x1xf32> to vector<10x128xf32>
    %19 = arith.addf %16, %18 : vector<10x128xf32>
    %cst_19 = arith.constant 0.000000e+00 : f32
    %20 = vector.broadcast %cst_19 : f32 to vector<10x128xf32>
    %21 = arith.maximumf %19, %20 : vector<10x128xf32>
    %c0_20 = arith.constant 0 : index
    %c0_21 = arith.constant 0 : index
    %22 = vector.load %arg10[%c0_20, %c0_21] : memref<5x10xf32, #tpu.memory_space<vmem>>, vector<5x10xf32>
    %cst_22 = arith.constant dense<0.000000e+00> : vector<5x128xf32>
    %23 = tpu.matmul %22, %21, %cst_22 {dimension_numbers = #tpu.dot_dimension_numbers<[1], [0], [0], [1], [0, 0, 1, 1], [], []>} : vector<5x10xf32>, vector<10x128xf32>, vector<5x128xf32> -> vector<5x128xf32>
    %c0_23 = arith.constant 0 : index
    %c0_24 = arith.constant 0 : index
    %24 = vector.load %arg11[%c0_23, %c0_24] : memref<5x1xf32, #tpu.memory_space<vmem>>, vector<5x1xf32>
    %25 = vector.broadcast %24 : vector<5x1xf32> to vector<5x128xf32>
    %26 = arith.addf %23, %25 : vector<5x128xf32>
    %cst_25 = arith.constant 0.000000e+00 : f32
    %27 = vector.broadcast %cst_25 : f32 to vector<5x128xf32>
    %28 = arith.maximumf %26, %27 : vector<5x128xf32>
    %c0_26 = arith.constant 0 : index
    %c0_27 = arith.constant 0 : index
    %29 = vector.load %arg12[%c0_26, %c0_27] : memref<1x5xf32, #tpu.memory_space<vmem>>, vector<1x5xf32>
    %cst_28 = arith.constant dense<0.000000e+00> : vector<1x128xf32>
    %30 = tpu.matmul %29, %28, %cst_28 {dimension_numbers = #tpu.dot_dimension_numbers<[1], [0], [0], [1], [0, 0, 1, 1], [], []>} : vector<1x5xf32>, vector<5x128xf32>, vector<1x128xf32> -> vector<1x128xf32>
    %c0_29 = arith.constant 0 : index
    %c0_30 = arith.constant 0 : index
    %31 = vector.load %arg13[%c0_29, %c0_30] : memref<1x1xf32, #tpu.memory_space<vmem>>, vector<1x1xf32>
    %32 = vector.broadcast %31 : vector<1x1xf32> to vector<1x128xf32>
    %33 = arith.addf %30, %32 : vector<1x128xf32>
    %34 = arith.negf %33 : vector<1x128xf32>
    %35 = math.exp %34 : vector<1x128xf32>
    %cst_31 = arith.constant 1.000000e+00 : f32
    %36 = vector.broadcast %cst_31 : f32 to vector<1x128xf32>
    %37 = arith.addf %36, %35 : vector<1x128xf32>
    %38 = arith.divf %36, %37 : vector<1x128xf32>
    %c0_32 = arith.constant 0 : index
    %c0_33 = arith.constant 0 : index
    %39 = vector.load %arg14[%c0_32, %c0_33] : memref<1x128xf32, #tpu.memory_space<vmem>>, vector<1x128xf32>
    tpu.vector_store %arg14[%c0_32, %c0_33], %38 {strides = array<i32>} : memref<1x128xf32, #tpu.memory_space<vmem>>, vector<1x128xf32>,
    return
  }
  func.func @transform_0(%arg0: i32) -> (i32, i32) {
    %c0_i32 = arith.constant 0 : i32
    %c0_i32_0 = arith.constant 0 : i32
    return %c0_i32, %arg0 : i32, i32
  }
  func.func @transform_1(%arg0: i32) -> (i32, i32) {
    %c0_i32 = arith.constant 0 : i32
    %c0_i32_0 = arith.constant 0 : i32
    return %c0_i32, %arg0 : i32, i32
  }
  func.func @transform_2(%arg0: i32) -> (i32, i32) {
    %c0_i32 = arith.constant 0 : i32
    %c0_i32_0 = arith.constant 0 : i32
    return %c0_i32, %arg0 : i32, i32
  }
  func.func @transform_3(%arg0: i32) -> (i32, i32) {
    %c0_i32 = arith.constant 0 : i32
    %c0_i32_0 = arith.constant 0 : i32
    return %c0_i32, %arg0 : i32, i32
  }
  func.func @transform_4(%arg0: i32) -> (i32, i32) {
    %c0_i32 = arith.constant 0 : i32
    %c0_i32_0 = arith.constant 0 : i32
    %c0_i32_1 = arith.constant 0 : i32
    return %c0_i32, %c0_i32_0 : i32, i32
  }
  func.func @transform_5(%arg0: i32) -> (i32, i32) {
    %c0_i32 = arith.constant 0 : i32
    %c0_i32_0 = arith.constant 0 : i32
    %c0_i32_1 = arith.constant 0 : i32
    return %c0_i32, %c0_i32_0 : i32, i32
  }
  func.func @transform_6(%arg0: i32) -> (i32, i32) {
    %c0_i32 = arith.constant 0 : i32
    %c0_i32_0 = arith.constant 0 : i32
    %c0_i32_1 = arith.constant 0 : i32
    return %c0_i32, %c0_i32_0 : i32, i32
  }
  func.func @transform_7(%arg0: i32) -> (i32, i32) {
    %c0_i32 = arith.constant 0 : i32
    %c0_i32_0 = arith.constant 0 : i32
    %c0_i32_1 = arith.constant 0 : i32
    return %c0_i32, %c0_i32_0 : i32, i32
  }
  func.func @transform_8(%arg0: i32) -> (i32, i32) {
    %c0_i32 = arith.constant 0 : i32
    %c0_i32_0 = arith.constant 0 : i32
    %c0_i32_1 = arith.constant 0 : i32
    return %c0_i32, %c0_i32_0 : i32, i32
  }
  func.func @transform_9(%arg0: i32) -> (i32, i32) {
    %c0_i32 = arith.constant 0 : i32
    %c0_i32_0 = arith.constant 0 : i32
    %c0_i32_1 = arith.constant 0 : i32
    return %c0_i32, %c0_i32_0 : i32, i32
  }
  func.func @transform_10(%arg0: i32) -> (i32, i32) {
    %c0_i32 = arith.constant 0 : i32
    %c0_i32_0 = arith.constant 0 : i32
    %c0_i32_1 = arith.constant 0 : i32
    return %c0_i32, %c0_i32_0 : i32, i32
  }
  func.func @transform_11(%arg0: i32) -> (i32, i32) {
    %c0_i32 = arith.constant 0 : i32
    %c0_i32_0 = arith.constant 0 : i32
    %c0_i32_1 = arith.constant 0 : i32
    return %c0_i32, %c0_i32_0 : i32, i32
  }
  func.func @transform_12(%arg0: i32) -> (i32, i32) {
    %c0_i32 = arith.constant 0 : i32
    %c0_i32_0 = arith.constant 0 : i32
    %c0_i32_1 = arith.constant 0 : i32
    return %c0_i32, %c0_i32_0 : i32, i32
  }
  func.func @transform_13(%arg0: i32) -> (i32, i32) {
    %c0_i32 = arith.constant 0 : i32
    %c0_i32_0 = arith.constant 0 : i32
    return %c0_i32, %arg0 : i32, i32
  }
}

</mosaic_0001>

<llo_original>
// kernel: caller_forward.1
$region0: #{caller_forward.1}
  #allocation0 [shape = 'u32[]', space=smem, size = 0x4, offset = 0x4, fixed_abs, tag = 'smem constant byte address 0x4 - core index']
  #allocation1 [shape = 'u32[144,128]{1,0:T(1,128)}', space=vmem, size = 0x12000, scoped, tag = 'internal scratch']
  #allocation2 [shape = 'f32[1,1]{1,0:T(1,128)S(1)}', space=vmem, size = 0x200, scoped, tag = 'scoped memory for caller_forward.1']
  %s0 = inlined_call_operand.vmem [shape: f32[13,8], index: 0, kind: input, shape index: {}]
  %s1 = inlined_call_operand.vmem [shape: f32[13,8], index: 1, kind: input, shape index: {}]
  %s2 = inlined_call_operand.vmem [shape: f32[1,8], index: 2, kind: input, shape index: {}]
  %s3 = inlined_call_operand.vmem [shape: f32[3,8], index: 3, kind: input, shape index: {}]
  %s4 = inlined_call_operand.vmem [shape: f32[10,13], index: 4, kind: input, shape index: {}]
  %s5 = inlined_call_operand.vmem [shape: f32[10,13], index: 5, kind: input, shape index: {}]
  %s6 = inlined_call_operand.vmem [shape: f32[10,1], index: 6, kind: input, shape index: {}]
  %s7 = inlined_call_operand.vmem [shape: f32[10,3], index: 7, kind: input, shape index: {}]
  %s8 = inlined_call_operand.vmem [shape: f32[10,1], index: 8, kind: input, shape index: {}]
  %s9 = inlined_call_operand.vmem [shape: f32[5,10], index: 9, kind: input, shape index: {}]
  %s10 = inlined_call_operand.vmem [shape: f32[5,1], index: 10, kind: input, shape index: {}]
  %s11 = inlined_call_operand.vmem [shape: f32[1,5], index: 11, kind: input, shape index: {}]
  %s12 = inlined_call_operand.<no memory space> [shape: f32[1,1], index: 12, kind: input, shape index: {}]
  %s13 = inlined_call_operand.hbm [shape: f32[1,8], index: 13, kind: output, shape index: {}]
  %s14 = sld [smem:[#allocation0]]
  $region62: #{caller_forward.1} parent=0
    _
  %s16 = ssub.s32 1, %s14
  %s17 = scalar_select 0, %s16, %s14
  %v18 = vstv %s12
  %19 = vst [vmem:[#allocation2] sm:$0x1] %v18
  $region1: #{caller_forward.1} parent=0
    #allocation3 [shape = 'u8[512]{0}', space=vmem, size = 0x400, scoped, tag = 'output window, operand 0, single buffered']
    #allocation4 [shape = 's32[1]{0}', space=sflag, size = 0x4, scoped, tag = 'scoped memory for caller_forward.1']
    %20 = vsyncpa [#allocation4], 0
    // Predicated region
    $region2: #{caller_forward.1} parent=1 // pred_check
      _
    $region3: #{caller_forward.1} parent=1 // pred_check_branch
      %22 = sbr.rel (0) target = $region5
    $region4: #{caller_forward.1} parent=1 // pred_region
      _
    $region5: #{caller_forward.1} parent=1 // pred_fallthru
      _
    // Predicated region
    $region6: #{caller_forward.1} parent=1 // pred_check
      _
    $region7: #{caller_forward.1} parent=1 // pred_check_branch
      %24 = sbr.rel (0) target = $region9
    $region8: #{caller_forward.1} parent=1 // pred_region
      _
    $region9: #{caller_forward.1} parent=1 // pred_fallthru
      _
    // Predicated region
    $region10: #{caller_forward.1} parent=1 // pred_check
      _
    $region11: #{caller_forward.1} parent=1 // pred_check_branch
      %26 = sbr.rel (0) target = $region13
    $region12: #{caller_forward.1} parent=1 // pred_region
      _
    $region13: #{caller_forward.1} parent=1 // pred_fallthru
      _
    // Predicated region
    $region14: #{caller_forward.1} parent=1 // pred_check
      _
    $region15: #{caller_forward.1} parent=1 // pred_check_branch
      %28 = sbr.rel (0) target = $region17
    $region16: #{caller_forward.1} parent=1 // pred_region
      _
    $region17: #{caller_forward.1} parent=1 // pred_fallthru
      _
    // Predicated region
    $region18: #{caller_forward.1} parent=1 // pred_check
      _
    $region19: #{caller_forward.1} parent=1 // pred_check_branch
      %30 = sbr.rel (0) target = $region21
    $region20: #{caller_forward.1} parent=1 // pred_region
      _
    $region21: #{caller_forward.1} parent=1 // pred_fallthru
      _
    // Predicated region
    $region22: #{caller_forward.1} parent=1 // pred_check
      _
    $region23: #{caller_forward.1} parent=1 // pred_check_branch
      %32 = sbr.rel (0) target = $region25
    $region24: #{caller_forward.1} parent=1 // pred_region
      _
    $region25: #{caller_forward.1} parent=1 // pred_fallthru
      _
    // Predicated region
    $region26: #{caller_forward.1} parent=1 // pred_check
      _
    $region27: #{caller_forward.1} parent=1 // pred_check_branch
      %34 = sbr.rel (0) target = $region29
    $region28: #{caller_forward.1} parent=1 // pred_region
      _
    $region29: #{caller_forward.1} parent=1 // pred_fallthru
      _
    // Predicated region
    $region30: #{caller_forward.1} parent=1 // pred_check
      _
    $region31: #{caller_forward.1} parent=1 // pred_check_branch
      %36 = sbr.rel (0) target = $region33
    $region32: #{caller_forward.1} parent=1 // pred_region
      _
    $region33: #{caller_forward.1} parent=1 // pred_fallthru
      _
    // Predicated region
    $region34: #{caller_forward.1} parent=1 // pred_check
      _
    $region35: #{caller_forward.1} parent=1 // pred_check_branch
      %38 = sbr.rel (0) target = $region37
    $region36: #{caller_forward.1} parent=1 // pred_region
      _
    $region37: #{caller_forward.1} parent=1 // pred_fallthru
      _
    // Predicated region
    $region38: #{caller_forward.1} parent=1 // pred_check
      _
    $region39: #{caller_forward.1} parent=1 // pred_check_branch
      %40 = sbr.rel (0) target = $region41
    $region40: #{caller_forward.1} parent=1 // pred_region
      _
    $region41: #{caller_forward.1} parent=1 // pred_fallthru
      _
    // Predicated region
    $region42: #{caller_forward.1} parent=1 // pred_check
      _
    $region43: #{caller_forward.1} parent=1 // pred_check_branch
      %42 = sbr.rel (0) target = $region45
    $region44: #{caller_forward.1} parent=1 // pred_region
      _
    $region45: #{caller_forward.1} parent=1 // pred_fallthru
      _
    // Predicated region
    $region46: #{caller_forward.1} parent=1 // pred_check
      _
    $region47: #{caller_forward.1} parent=1 // pred_check_branch
      %44 = sbr.rel (0) target = $region49
    $region48: #{caller_forward.1} parent=1 // pred_region
      _
    $region49: #{caller_forward.1} parent=1 // pred_fallthru
      _
    // Predicated region
    $region50: #{caller_forward.1} parent=1 // pred_check
      _
    $region51: #{caller_forward.1} parent=1 // pred_check_branch
      %46 = sbr.rel (0) target = $region53
    $region52: #{caller_forward.1} parent=1 // pred_region
      _
    $region53: #{caller_forward.1} parent=1 // pred_fallthru
      _
    %v47 = vld [vmem:[%s4] sm:$0xff]
    %v48 = vld [vmem:[%s4 + $0x8] sm:$0x3]
    %v49 = vld [vmem:[%s0] sm:$0xff]
    %v50 = vld [vmem:[%s0 + $0x8] sm:$0x1f]
    %v51 = vld [vmem:[%s5] sm:$0xff]
    %v52 = vld [vmem:[%s5 + $0x8] sm:$0x3]
    %v53 = vld [vmem:[%s1] sm:$0xff]
    %v54 = vld [vmem:[%s1 + $0x8] sm:$0x1f]
    %vm55 = vcmask 105472
    %v57 = vsel %vm55, %v51, 0
    %v60 = vsel %vm55, %v52, 0
    %vm62 = vcmask 1044480
    %v64 = vsel %vm62, %v54, 0
    %66 = vmatprep.subr.mxu0 0.0
    %67 = vmatpush1.msra.mxu0 %v53
    %68 = vmatprep.subr.mxu0 0.0
    %69 = vmatpush1.msra.mxu0 %v64
    %70 = vmatprep.subr.mxu0 0.0
    %71 = vmatpush1.msra.mxu0 0.0
    %72 = vmatprep.subr.mxu0 0.0
    %73 = vmatpush1.msra.mxu0 0.0
    %74 = vmatprep.subr.mxu0 0.0
    %75 = vmatpush1.msra.mxu0 0.0
    %76 = vmatprep.subr.mxu0 0.0
    %77 = vmatpush1.msra.mxu0 0.0
    %78 = vmatprep.subr.mxu0 0.0
    %79 = vmatpush1.msra.mxu0 0.0
    %80 = vmatprep.subr.mxu0 0.0
    %81 = vmatpush1.msra.mxu0 0.0
    %82 = vmatprep.subr.mxu0 0.0
    %83 = vmatpush1.msra.mxu0 0.0
    %84 = vmatprep.subr.mxu0 0.0
    %85 = vmatpush1.msra.mxu0 0.0
    %86 = vmatprep.subr.mxu0 0.0
    %87 = vmatpush1.msra.mxu0 0.0
    %88 = vmatprep.subr.mxu0 0.0
    %89 = vmatpush1.msra.mxu0 0.0
    %90 = vmatprep.subr.mxu0 0.0
    %91 = vmatpush1.msra.mxu0 0.0
    %92 = vmatprep.subr.mxu0 0.0
    %93 = vmatpush1.msra.mxu0 0.0
    %94 = vmatprep.subr.mxu0 0.0
    %95 = vmatpush1.msra.mxu0 0.0
    %96 = vmatprep.subr.mxu0 0.0
    %97 = vmatpush1.msra.mxu0 0.0
    %98 = vmatprep.subr.mxu0 0.0
    %99 = vmatpush1.msra.mxu0 0.0
    %100 = vmatprep.subr.mxu0 0.0
    %101 = vmatpush1.msra.mxu0 0.0
    %102 = vmatprep.subr.mxu0 0.0
    %103 = vmatpush1.msra.mxu0 0.0
    %104 = vmatprep.subr.mxu0 0.0
    %105 = vmatpush1.msra.mxu0 0.0
    %106 = vmatprep.subr.mxu0 0.0
    %107 = vmatpush1.msra.mxu0 0.0
    %108 = vmatprep.subr.mxu0 0.0
    %109 = vmatpush1.msra.mxu0 0.0
    %110 = vmatprep.subr.mxu0 0.0
    %111 = vmatpush1.msra.mxu0 0.0
    %112 = vmatprep.subr.mxu0 0.0
    %113 = vmatpush1.msra.mxu0 0.0
    %114 = vmatprep.subr.mxu0 0.0
    %115 = vmatpush1.msra.mxu0 0.0
    %116 = vmatprep.subr.mxu0 0.0
    %117 = vmatpush1.msra.mxu0 0.0
    %118 = vmatprep.subr.mxu0 0.0
    %119 = vmatpush1.msra.mxu0 0.0
    %120 = vmatprep.subr.mxu0 0.0
    %121 = vmatpush1.msra.mxu0 0.0
    %122 = vmatprep.subr.mxu0 0.0
    %123 = vmatpush1.msra.mxu0 0.0
    %124 = vmatprep.subr.mxu0 0.0
    %125 = vmatpush1.msra.mxu0 0.0
    %126 = vmatprep.subr.mxu0 0.0
    %127 = vmatpush1.msra.mxu0 0.0
    %128 = vmatprep.subr.mxu0 0.0
    %129 = vmatpush1.msra.mxu0 0.0
    %130 = vmatprep.mubr.f32.mxu0 0.0
    %131 = vmatmul.mubr.f32.gmra.mrb[0].mxu0 %v57
    %v132 = vpop.f32.mrb[0].mxu0
    %v133 = vadd.f32 0.0, %v132
    %v134 = vpop.f32.mrb[0].mxu0
    %135 = vmatprep.mubr.f32.mxu0 0.0
    %136 = vmatmul.mubr.f32.gmra.mrb[0].mxu0 %v60
    %v137 = vpop.f32.mrb[0].mxu0
    %v138 = vadd.f32 0.0, %v137
    %v139 = vpop.f32.mrb[0].mxu0
    %140 = vdwg.mxu0
    %v142 = vsel %vm55, %v47, 0
    %v145 = vsel %vm55, %v48, 0
    %v148 = vsel %vm62, %v50, 0
    %150 = vmatprep.subr.mxu0 0.0
    %151 = vmatpush1.msra.mxu0 %v49
    %152 = vmatprep.subr.mxu0 0.0
    %153 = vmatpush1.msra.mxu0 %v148
    %154 = vmatprep.subr.mxu0 0.0
    %155 = vmatpush1.msra.mxu0 0.0
    %156 = vmatprep.subr.mxu0 0.0
    %157 = vmatpush1.msra.mxu0 0.0
    %158 = vmatprep.subr.mxu0 0.0
    %159 = vmatpush1.msra.mxu0 0.0
    %160 = vmatprep.subr.mxu0 0.0
    %161 = vmatpush1.msra.mxu0 0.0
    %162 = vmatprep.subr.mxu0 0.0
    %163 = vmatpush1.msra.mxu0 0.0
    %164 = vmatprep.subr.mxu0 0.0
    %165 = vmatpush1.msra.mxu0 0.0
    %166 = vmatprep.subr.mxu0 0.0
    %167 = vmatpush1.msra.mxu0 0.0
    %168 = vmatprep.subr.mxu0 0.0
    %169 = vmatpush1.msra.mxu0 0.0
    %170 = vmatprep.subr.mxu0 0.0
    %171 = vmatpush1.msra.mxu0 0.0
    %172 = vmatprep.subr.mxu0 0.0
    %173 = vmatpush1.msra.mxu0 0.0
    %174 = vmatprep.subr.mxu0 0.0
    %175 = vmatpush1.msra.mxu0 0.0
    %176 = vmatprep.subr.mxu0 0.0
    %177 = vmatpush1.msra.mxu0 0.0
    %178 = vmatprep.subr.mxu0 0.0
    %179 = vmatpush1.msra.mxu0 0.0
    %180 = vmatprep.subr.mxu0 0.0
    %181 = vmatpush1.msra.mxu0 0.0
    %182 = vmatprep.subr.mxu0 0.0
    %183 = vmatpush1.msra.mxu0 0.0
    %184 = vmatprep.subr.mxu0 0.0
    %185 = vmatpush1.msra.mxu0 0.0
    %186 = vmatprep.subr.mxu0 0.0
    %187 = vmatpush1.msra.mxu0 0.0
    %188 = vmatprep.subr.mxu0 0.0
    %189 = vmatpush1.msra.mxu0 0.0
    %190 = vmatprep.subr.mxu0 0.0
    %191 = vmatpush1.msra.mxu0 0.0
    %192 = vmatprep.subr.mxu0 0.0
    %193 = vmatpush1.msra.mxu0 0.0
    %194 = vmatprep.subr.mxu0 0.0
    %195 = vmatpush1.msra.mxu0 0.0
    %196 = vmatprep.subr.mxu0 0.0
    %197 = vmatpush1.msra.mxu0 0.0
    %198 = vmatprep.subr.mxu0 0.0
    %199 = vmatpush1.msra.mxu0 0.0
    %200 = vmatprep.subr.mxu0 0.0
    %201 = vmatpush1.msra.mxu0 0.0
    %202 = vmatprep.subr.mxu0 0.0
    %203 = vmatpush1.msra.mxu0 0.0
    %204 = vmatprep.subr.mxu0 0.0
    %205 = vmatpush1.msra.mxu0 0.0
    %206 = vmatprep.subr.mxu0 0.0
    %207 = vmatpush1.msra.mxu0 0.0
    %208 = vmatprep.subr.mxu0 0.0
    %209 = vmatpush1.msra.mxu0 0.0
    %210 = vmatprep.subr.mxu0 0.0
    %211 = vmatpush1.msra.mxu0 0.0
    %212 = vmatprep.subr.mxu0 0.0
    %213 = vmatpush1.msra.mxu0 0.0
    %214 = vmatprep.mubr.f32.mxu0 0.0
    %215 = vmatmul.mubr.f32.gmra.mrb[0].mxu0 %v142
    %v216 = vpop.f32.mrb[0].mxu0
    %v217 = vadd.f32 %v133, %v216
    %v218 = vpop.f32.mrb[0].mxu0
    %219 = vmatprep.mubr.f32.mxu0 0.0
    %220 = vmatmul.mubr.f32.gmra.mrb[0].mxu0 %v145
    %v221 = vpop.f32.mrb[0].mxu0
    %v222 = vadd.f32 %v138, %v221
    %v223 = vpop.f32.mrb[0].mxu0
    %224 = vdwg.mxu0
    %v225 = vld [vmem:[%s6] sm:$0xff]
    %v226 = vld [vmem:[%s6 + $0x8] sm:$0x3]
    %v227 = vld [vmem:[%s2] sm:$0x1]
    %229 = vset.pattern.permute.xlu0 0
    %230 = vperm.xlu0 %229, %v225
    %v231 = vpop.permute.xlu0 %230
    %234 = vset.pattern.permute.xlu0 0
    %235 = vperm.xlu0 %234, %v226
    %v236 = vpop.permute.xlu0 %235
    %v239 = vlaneseq
    %v240 = vshrl.u32 %v239, 7
    %v241 = vsub.s32 0, %v240
    %v242 = vrot.slane %v227, %v241
    %v244 = vmul.f32 %v231, %v242
    %v245 = vmul.f32 %v236, %v242
    %v246 = vadd.f32 %v217, %v244
    %v247 = vadd.f32 %v222, %v245
    %v248 = vld [vmem:[%s7] sm:$0xff]
    %v249 = vld [vmem:[%s7 + $0x8] sm:$0x3]
    %v250 = vld [vmem:[%s3] sm:$0x7]
    %vm251 = vcmask 23552
    %v253 = vsel %vm251, %v248, 0
    %v256 = vsel %vm251, %v249, 0
    %vm258 = vcmask 1042432
    %v260 = vsel %vm258, %v250, 0
    %262 = vmatprep.subr.mxu0 0.0
    %263 = vmatpush1.msra.mxu0 %v260
    %264 = vmatprep.subr.mxu0 0.0
    %265 = vmatpush1.msra.mxu0 0.0
    %266 = vmatprep.subr.mxu0 0.0
    %267 = vmatpush1.msra.mxu0 0.0
    %268 = vmatprep.subr.mxu0 0.0
    %269 = vmatpush1.msra.mxu0 0.0
    %270 = vmatprep.subr.mxu0 0.0
    %271 = vmatpush1.msra.mxu0 0.0
    %272 = vmatprep.subr.mxu0 0.0
    %273 = vmatpush1.msra.mxu0 0.0
    %274 = vmatprep.subr.mxu0 0.0
    %275 = vmatpush1.msra.mxu0 0.0
    %276 = vmatprep.subr.mxu0 0.0
    %277 = vmatpush1.msra.mxu0 0.0
    %278 = vmatprep.subr.mxu0 0.0
    %279 = vmatpush1.msra.mxu0 0.0
    %280 = vmatprep.subr.mxu0 0.0
    %281 = vmatpush1.msra.mxu0 0.0
    %282 = vmatprep.subr.mxu0 0.0
    %283 = vmatpush1.msra.mxu0 0.0
    %284 = vmatprep.subr.mxu0 0.0
    %285 = vmatpush1.msra.mxu0 0.0
    %286 = vmatprep.subr.mxu0 0.0
    %287 = vmatpush1.msra.mxu0 0.0
    %288 = vmatprep.subr.mxu0 0.0
    %289 = vmatpush1.msra.mxu0 0.0
    %290 = vmatprep.subr.mxu0 0.0
    %291 = vmatpush1.msra.mxu0 0.0
    %292 = vmatprep.subr.mxu0 0.0
    %293 = vmatpush1.msra.mxu0 0.0
    %294 = vmatprep.subr.mxu0 0.0
    %295 = vmatpush1.msra.mxu0 0.0
    %296 = vmatprep.subr.mxu0 0.0
    %297 = vmatpush1.msra.mxu0 0.0
    %298 = vmatprep.subr.mxu0 0.0
    %299 = vmatpush1.msra.mxu0 0.0
    %300 = vmatprep.subr.mxu0 0.0
    %301 = vmatpush1.msra.mxu0 0.0
    %302 = vmatprep.subr.mxu0 0.0
    %303 = vmatpush1.msra.mxu0 0.0
    %304 = vmatprep.subr.mxu0 0.0
    %305 = vmatpush1.msra.mxu0 0.0
    %306 = vmatprep.subr.mxu0 0.0
    %307 = vmatpush1.msra.mxu0 0.0
    %308 = vmatprep.subr.mxu0 0.0
    %309 = vmatpush1.msra.mxu0 0.0
    %310 = vmatprep.subr.mxu0 0.0
    %311 = vmatpush1.msra.mxu0 0.0
    %312 = vmatprep.subr.mxu0 0.0
    %313 = vmatpush1.msra.mxu0 0.0
    %314 = vmatprep.subr.mxu0 0.0
    %315 = vmatpush1.msra.mxu0 0.0
    %316 = vmatprep.subr.mxu0 0.0
    %317 = vmatpush1.msra.mxu0 0.0
    %318 = vmatprep.subr.mxu0 0.0
    %319 = vmatpush1.msra.mxu0 0.0
    %320 = vmatprep.subr.mxu0 0.0
    %321 = vmatpush1.msra.mxu0 0.0
    %322 = vmatprep.subr.mxu0 0.0
    %323 = vmatpush1.msra.mxu0 0.0
    %324 = vmatprep.subr.mxu0 0.0
    %325 = vmatpush1.msra.mxu0 0.0
    %326 = vmatprep.mubr.f32.mxu0 0.0
    %327 = vmatmul.mubr.f32.gmra.mrb[0].mxu0 %v253
    %v328 = vpop.f32.mrb[0].mxu0
    %v329 = vadd.f32 0.0, %v328
    %v330 = vpop.f32.mrb[0].mxu0
    %331 = vmatprep.mubr.f32.mxu0 0.0
    %332 = vmatmul.mubr.f32.gmra.mrb[0].mxu0 %v256
    %v333 = vpop.f32.mrb[0].mxu0
    %v334 = vadd.f32 0.0, %v333
    %v335 = vpop.f32.mrb[0].mxu0
    %336 = vdwg.mxu0
    %v337 = vadd.f32 %v246, %v329
    %v338 = vadd.f32 %v247, %v334
    %v339 = vld [vmem:[%s8] sm:$0xff]
    %v340 = vld [vmem:[%s8 + $0x8] sm:$0x3]
    %342 = vset.pattern.permute.xlu0 0
    %343 = vperm.xlu0 %342, %v339
    %v344 = vpop.permute.xlu0 %343
    %347 = vset.pattern.permute.xlu0 0
    %348 = vperm.xlu0 %347, %v340
    %v349 = vpop.permute.xlu0 %348
    %v351 = vadd.f32 %v337, %v344
    %v352 = vadd.f32 %v338, %v349
    %v353 = vmax.f32 %v351, 0.0
    %v354 = vmax.f32 %v352, 0.0
    %v355 = vld [vmem:[%s9] sm:$0x1f]
    %v356 = vld [vmem:[%s10] sm:$0x1f]
    %358 = vset.pattern.permute.xlu0 0
    %359 = vperm.xlu0 %358, %v356
    %v360 = vpop.permute.xlu0 %359
    %vm362 = vcmask 80896
    %v364 = vsel %vm362, %v355, 0
    %vm366 = vcmask 1041408
    %v368 = vsel %vm366, %v354, 0
    %370 = vmatprep.subr.mxu0 0.0
    %371 = vmatpush1.msra.mxu0 %v353
    %372 = vmatprep.subr.mxu0 0.0
    %373 = vmatpush1.msra.mxu0 %v368
    %374 = vmatprep.subr.mxu0 0.0
    %375 = vmatpush1.msra.mxu0 0.0
    %376 = vmatprep.subr.mxu0 0.0
    %377 = vmatpush1.msra.mxu0 0.0
    %378 = vmatprep.subr.mxu0 0.0
    %379 = vmatpush1.msra.mxu0 0.0
    %380 = vmatprep.subr.mxu0 0.0
    %381 = vmatpush1.msra.mxu0 0.0
    %382 = vmatprep.subr.mxu0 0.0
    %383 = vmatpush1.msra.mxu0 0.0
    %384 = vmatprep.subr.mxu0 0.0
    %385 = vmatpush1.msra.mxu0 0.0
    %386 = vmatprep.subr.mxu0 0.0
    %387 = vmatpush1.msra.mxu0 0.0
    %388 = vmatprep.subr.mxu0 0.0
    %389 = vmatpush1.msra.mxu0 0.0
    %390 = vmatprep.subr.mxu0 0.0
    %391 = vmatpush1.msra.mxu0 0.0
    %392 = vmatprep.subr.mxu0 0.0
    %393 = vmatpush1.msra.mxu0 0.0
    %394 = vmatprep.subr.mxu0 0.0
    %395 = vmatpush1.msra.mxu0 0.0
    %396 = vmatprep.subr.mxu0 0.0
    %397 = vmatpush1.msra.mxu0 0.0
    %398 = vmatprep.subr.mxu0 0.0
    %399 = vmatpush1.msra.mxu0 0.0
    %400 = vmatprep.subr.mxu0 0.0
    %401 = vmatpush1.msra.mxu0 0.0
    %402 = vmatprep.subr.mxu0 0.0
    %403 = vmatpush1.msra.mxu0 0.0
    %404 = vmatprep.subr.mxu0 0.0
    %405 = vmatpush1.msra.mxu0 0.0
    %406 = vmatprep.subr.mxu0 0.0
    %407 = vmatpush1.msra.mxu0 0.0
    %408 = vmatprep.subr.mxu0 0.0
    %409 = vmatpush1.msra.mxu0 0.0
    %410 = vmatprep.subr.mxu0 0.0
    %411 = vmatpush1.msra.mxu0 0.0
    %412 = vmatprep.subr.mxu0 0.0
    %413 = vmatpush1.msra.mxu0 0.0
    %414 = vmatprep.subr.mxu0 0.0
    %415 = vmatpush1.msra.mxu0 0.0
    %416 = vmatprep.subr.mxu0 0.0
    %417 = vmatpush1.msra.mxu0 0.0
    %418 = vmatprep.subr.mxu0 0.0
    %419 = vmatpush1.msra.mxu0 0.0
    %420 = vmatprep.subr.mxu0 0.0
    %421 = vmatpush1.msra.mxu0 0.0
    %422 = vmatprep.subr.mxu0 0.0
    %423 = vmatpush1.msra.mxu0 0.0
    %424 = vmatprep.subr.mxu0 0.0
    %425 = vmatpush1.msra.mxu0 0.0
    %426 = vmatprep.subr.mxu0 0.0
    %427 = vmatpush1.msra.mxu0 0.0
    %428 = vmatprep.subr.mxu0 0.0
    %429 = vmatpush1.msra.mxu0 0.0
    %430 = vmatprep.subr.mxu0 0.0
    %431 = vmatpush1.msra.mxu0 0.0
    %432 = vmatprep.subr.mxu0 0.0
    %433 = vmatpush1.msra.mxu0 0.0
    %434 = vmatprep.mubr.f32.mxu0 0.0
    %435 = vmatmul.mubr.f32.gmra.mrb[0].mxu0 %v364
    %v436 = vpop.f32.mrb[0].mxu0
    %v437 = vadd.f32 %v360, %v436
    %v438 = vpop.f32.mrb[0].mxu0
    %439 = vdwg.mxu0
    %v440 = vmax.f32 %v437, 0.0
    %v441 = vld [vmem:[%s11] sm:$0x1]
    %v442 = vld [vmem:[#allocation2] sm:$0x1]
    %444 = vset.pattern.permute.xlu0 0
    %445 = vperm.xlu0 %444, %v442
    %v446 = vpop.permute.xlu0 %445
    %v448 = vlaneseq
    %v449 = vshrl.u32 %v448, 7
    %v450 = vsub.s32 0, %v449
    %v451 = vrot.slane %v446, %v450
    %vm452 = vcmask 39936
    %v454 = vsel %vm452, %v441, 0
    %v457 = vsel %vm62, %v440, 0
    %459 = vmatprep.subr.mxu0 0.0
    %460 = vmatpush1.msra.mxu0 %v457
    %461 = vmatprep.subr.mxu0 0.0
    %462 = vmatpush1.msra.mxu0 0.0
    %463 = vmatprep.subr.mxu0 0.0
    %464 = vmatpush1.msra.mxu0 0.0
    %465 = vmatprep.subr.mxu0 0.0
    %466 = vmatpush1.msra.mxu0 0.0
    %467 = vmatprep.subr.mxu0 0.0
    %468 = vmatpush1.msra.mxu0 0.0
    %469 = vmatprep.subr.mxu0 0.0
    %470 = vmatpush1.msra.mxu0 0.0
    %471 = vmatprep.subr.mxu0 0.0
    %472 = vmatpush1.msra.mxu0 0.0
    %473 = vmatprep.subr.mxu0 0.0
    %474 = vmatpush1.msra.mxu0 0.0
    %475 = vmatprep.subr.mxu0 0.0
    %476 = vmatpush1.msra.mxu0 0.0
    %477 = vmatprep.subr.mxu0 0.0
    %478 = vmatpush1.msra.mxu0 0.0
    %479 = vmatprep.subr.mxu0 0.0
    %480 = vmatpush1.msra.mxu0 0.0
    %481 = vmatprep.subr.mxu0 0.0
    %482 = vmatpush1.msra.mxu0 0.0
    %483 = vmatprep.subr.mxu0 0.0
    %484 = vmatpush1.msra.mxu0 0.0
    %485 = vmatprep.subr.mxu0 0.0
    %486 = vmatpush1.msra.mxu0 0.0
    %487 = vmatprep.subr.mxu0 0.0
    %488 = vmatpush1.msra.mxu0 0.0
    %489 = vmatprep.subr.mxu0 0.0
    %490 = vmatpush1.msra.mxu0 0.0
    %491 = vmatprep.subr.mxu0 0.0
    %492 = vmatpush1.msra.mxu0 0.0
    %493 = vmatprep.subr.mxu0 0.0
    %494 = vmatpush1.msra.mxu0 0.0
    %495 = vmatprep.subr.mxu0 0.0
    %496 = vmatpush1.msra.mxu0 0.0
    %497 = vmatprep.subr.mxu0 0.0
    %498 = vmatpush1.msra.mxu0 0.0
    %499 = vmatprep.subr.mxu0 0.0
    %500 = vmatpush1.msra.mxu0 0.0
    %501 = vmatprep.subr.mxu0 0.0
    %502 = vmatpush1.msra.mxu0 0.0
    %503 = vmatprep.subr.mxu0 0.0
    %504 = vmatpush1.msra.mxu0 0.0
    %505 = vmatprep.subr.mxu0 0.0
    %506 = vmatpush1.msra.mxu0 0.0
    %507 = vmatprep.subr.mxu0 0.0
    %508 = vmatpush1.msra.mxu0 0.0
    %509 = vmatprep.subr.mxu0 0.0
    %510 = vmatpush1.msra.mxu0 0.0
    %511 = vmatprep.subr.mxu0 0.0
    %512 = vmatpush1.msra.mxu0 0.0
    %513 = vmatprep.subr.mxu0 0.0
    %514 = vmatpush1.msra.mxu0 0.0
    %515 = vmatprep.subr.mxu0 0.0
    %516 = vmatpush1.msra.mxu0 0.0
    %517 = vmatprep.subr.mxu0 0.0
    %518 = vmatpush1.msra.mxu0 0.0
    %519 = vmatprep.subr.mxu0 0.0
    %520 = vmatpush1.msra.mxu0 0.0
    %521 = vmatprep.subr.mxu0 0.0
    %522 = vmatpush1.msra.mxu0 0.0
    %523 = vmatprep.mubr.f32.mxu0 0.0
    %524 = vmatmul.mubr.f32.gmra.mrb[0].mxu0 %v454
    %v525 = vpop.f32.mrb[0].mxu0
    %v526 = vadd.f32 %v451, %v525
    %v527 = vpop.f32.mrb[0].mxu0
    %528 = vdwg.mxu0
    %v529 = vxor.u32 %v526, 2147483648
    %v530 = vmul.f32 %v529, 1.442695
    %v531 = vpow.pop %v530
    %v532 = vadd.f32 %v531, 1.0
    %v533 = vrcp.pop %v532
    %v534 = vmul.f32 1.0, %v533
    %535 = vst [vmem:[#allocation3] sm:$0x1] %v534
    // Predicated region
    $region54: #{caller_forward.1} parent=1 // pred_check
      _
    $region55: #{caller_forward.1} parent=1 // pred_check_branch
      %537 = sbr.rel (0) target = $region57
    $region56: #{caller_forward.1} parent=1 // pred_region
      %s539 = ssub.s32 16, 16
      %540 = vsyncadd [#allocation4], %s539
      %s542 = sshll.u32 [#allocation3], 4
      %s543 = int_to_ptr.vmem [resolvable:$true] %s542
      %545 = dma.vmem_to_hbm [thread:$0]  %s543, 16, %s13, [#allocation4]
    $region57: #{caller_forward.1} parent=1 // pred_fallthru
      _
    // Predicated region
    $region58: #{caller_forward.1} parent=1 // pred_check
      _
    $region59: #{caller_forward.1} parent=1 // pred_check_branch
      %547 = sbr.rel (0) target = $region61
    $region60: #{caller_forward.1} parent=1 // pred_region
      %548 = dma.done [#allocation4], 16
    $region61: #{caller_forward.1} parent=1 // pred_fallthru
      _
    %549 = vsyncpa [#allocation4], 1

</llo_original>
